<compile_context>
chip_gen: v5e
topology: v5e:2x2
jax: 0.10.0
libtpu: 0.0.40
codegen_flags: <defaults>
</compile_context>

<pallas_src>
import functools

import jax
import jax.numpy as jnp
from jax.experimental import pallas as pl
from jax.experimental.pallas import tpu as pltpu


def _round_up(a, m):
    return (a + m - 1) // m * m


def _conv_relu_kernel(x_ref, w_ref, b_ref, o_ref, *, k_taps, lout, shift_taps):
    # x_ref: (1, T, C_in, Lx)  bf16   T==1 (taps via lane shift) or T==K (pre-decimated)
    # w_ref: (K, C_out, C_in)  bf16
    # b_ref: (C_out, 1)        f32
    # o_ref: (1, C_out, lout)  f32    lane-dense (lout is a multiple of 128)
    w = w_ref[...]
    c_out = w.shape[1]
    # Start the accumulator from the broadcast bias (f32 epilogue).
    acc = jnp.broadcast_to(b_ref[...], (c_out, lout)).astype(jnp.float32)

    if shift_taps:
        x = x_ref[0, 0]                              # (C_in, Lx) bf16

    for k in range(k_taps):                          # K is tiny & static -> unrolled
        if shift_taps:
            xk = x[:, k:k + lout]                    # static lane shift, in-register
        else:
            xk = x_ref[0, k]                         # pre-decimated tap (C_in, lout)
        # (C_out, C_in) @ (C_in, lout) -> (C_out, lout), f32 accumulate.
        acc = acc + jnp.dot(w[k], xk, preferred_element_type=jnp.float32)

    o_ref[0] = jnp.maximum(acc, 0.0).astype(o_ref.dtype)


@functools.partial(jax.jit, static_argnames=("stride",))
def conv_relu_forward(x, weight, bias, *, stride=1):
    """ConvRelu forward: Conv1d(C_in, C_out, K, stride, padding=1) then ReLU.

    x:      (B, C_in, L)       NCL, PyTorch layout
    weight: (C_out, C_in, K)   PyTorch Conv1d layout
    bias:   (C_out,)
    returns (B, C_out, L_out) with L_out = (L + 2 - K)//stride + 1
    """
    B, C_in, L = x.shape
    C_out, _, K = weight.shape

    # padding=1 is hard-coded inside the module's nn.Sequential.
    Lp = L + 2
    L_out = (Lp - K) // stride + 1
    lout = _round_up(L_out, 128)                     # lane-dense output extent

    xp = jnp.pad(x, ((0, 0), (0, 0), (1, 1))).astype(jnp.bfloat16)

    if stride == 1:
        # Taps are built inside the kernel by lane shifts -> no im2col in HBM.
        lx = _round_up(lout + K - 1, 128)
        x4 = jnp.pad(xp, ((0, 0), (0, 0), (0, lx - Lp)))[:, None]     # (B,1,C_in,lx)
        t_dim, shift = 1, True
    else:
        # stride > 1: one strided slice per tap (L stays minor, no transpose,
        # ~K/stride read amplification instead of the old K).
        taps = [xp[:, :, k:k + stride * (L_out - 1) + 1:stride] for k in range(K)]
        x4 = jnp.stack(taps, axis=1)                                  # (B,K,C_in,L_out)
        x4 = jnp.pad(x4, ((0, 0), (0, 0), (0, 0), (0, lout - L_out)))
        t_dim, shift = K, False

    w3 = jnp.transpose(weight, (2, 0, 1)).astype(jnp.bfloat16)        # (K,C_out,C_in)
    b2 = bias.astype(jnp.float32).reshape(C_out, 1)

    l_last = x4.shape[-1]
    kernel = functools.partial(
        _conv_relu_kernel, k_taps=K, lout=lout, shift_taps=shift)

    out = pl.pallas_call(
        kernel,
        out_shape=jax.ShapeDtypeStruct((B, C_out, lout), jnp.float32),
        grid=(B,),
        in_specs=[
            pl.BlockSpec((1, t_dim, C_in, l_last), lambda b: (b, 0, 0, 0)),
            pl.BlockSpec((K, C_out, C_in), lambda b: (0, 0, 0)),
            pl.BlockSpec((C_out, 1), lambda b: (0, 0)),
        ],
        out_specs=pl.BlockSpec((1, C_out, lout), lambda b: (b, 0, 0)),
        compiler_params=pltpu.CompilerParams(
            dimension_semantics=("parallel",),
        ),
    )(x4, w3, b2)

    # Already in (B, C_out, L) order — just drop the lane padding.
    return out[:, :, :L_out]


if __name__ == "__main__":
    key = jax.random.PRNGKey(0)
    kx, kw1, kb1, kw2, kb2 = jax.random.split(key, 5)

    B, C_in, C_out, L = 2, 4, 8, 16
    x = jax.random.normal(kx, (B, C_in, L), jnp.float32)

    def torch_like_init(kw, kb, c_out, c_in, k):
        fan_in = c_in * k
        bound = 1.0 / (fan_in ** 0.5)
        w = jax.random.uniform(kw, (c_out, c_in, k), jnp.float32, -bound, bound)
        b = jax.random.uniform(kb, (c_out,), jnp.float32, -bound, bound)
        return w, b

    def reference(x, w, b, stride):
        y = jax.lax.conv_general_dilated(
            x, w, window_strides=(stride,), padding=((1, 1),),
            dimension_numbers=("NCH", "OIH", "NCH"))
        return jnp.maximum(y + b[None, :, None], 0.0)

    # Default ConvRelu instantiation: kernel_size=1, stride=1, padding=1.
    w1, b1 = torch_like_init(kw1, kb1, C_out, C_in, 1)
    y1 = conv_relu_forward(x, w1, b1, stride=1)
    jax.block_until_ready(y1)
    r1 = reference(x, w1, b1, 1)
    assert y1.shape == (B, C_out, L + 2)
    assert bool(jnp.all(y1 >= 0.0))
    assert bool(jnp.allclose(y1, r1, atol=5e-2, rtol=5e-2))

    # General path: kernel_size=3, stride=2 (padding stays 1, as in the module).
    w2, b2 = torch_like_init(kw2, kb2, C_out, C_in, 3)
    y2 = conv_relu_forward(x, w2, b2, stride=2)
    jax.block_until_ready(y2)
    r2 = reference(x, w2, b2, 2)
    assert y2.shape == (B, C_out, (L + 2 - 3) // 2 + 1)
    assert bool(jnp.all(y2 >= 0.0))
    assert bool(jnp.allclose(y2, r2, atol=5e-2, rtol=5e-2))

    print("KERNEL_OK")
</pallas_src>

<mosaic_0001>
module attributes {stable_mosaic.version = 11 : i64} {
  func.func @_conv_relu_kernel(%arg0: i32, %arg1: memref<1x1x4x128xbf16, #tpu.memory_space<vmem>>, %arg2: memref<1x8x4xbf16, #tpu.memory_space<vmem>>, %arg3: memref<8x1xf32, #tpu.memory_space<vmem>>, %arg4: memref<1x8x128xf32, #tpu.memory_space<vmem>>) attributes {dimension_semantics = [#tpu.dimension_semantics<parallel>], iteration_bounds = array<i64: 2>, scalar_prefetch = 0 : i64, scratch_operands = 0 : i64, tpu.core_type = #tpu.core_type<tc>, window_params = [{transform_indices = @transform_0, window_bounds = array<i64: 1, 1, 4, 128>}, {pipeline_mode = #tpu.pipeline_mode<synchronous>, transform_indices = @transform_1, window_bounds = array<i64: 1, 8, 4>}, {pipeline_mode = #tpu.pipeline_mode<synchronous>, transform_indices = @transform_2, window_bounds = array<i64: 8, 1>}, {transform_indices = @transform_3, window_bounds = array<i64: 1, 8, 128>}]} {
    %c0 = arith.constant 0 : index
    %c0_0 = arith.constant 0 : index
    %c0_1 = arith.constant 0 : index
    %0 = vector.load %arg2[%c0, %c0_0, %c0_1] : memref<1x8x4xbf16, #tpu.memory_space<vmem>>, vector<1x8x4xbf16>
    %c0_2 = arith.constant 0 : index
    %c0_3 = arith.constant 0 : index
    %1 = vector.load %arg3[%c0_2, %c0_3] : memref<8x1xf32, #tpu.memory_space<vmem>>, vector<8x1xf32>
    %2 = vector.shape_cast %1 : vector<8x1xf32> to vector<8x1xf32>
    %3 = vector.broadcast %2 : vector<8x1xf32> to vector<8x128xf32>
    %c0_4 = arith.constant 0 : index
    %c0_5 = arith.constant 0 : index
    %c0_6 = arith.constant 0 : index
    %c0_7 = arith.constant 0 : index
    %4 = vector.load %arg1[%c0_4, %c0_5, %c0_6, %c0_7] : memref<1x1x4x128xbf16, #tpu.memory_space<vmem>>, vector<1x1x4x128xbf16>
    %5 = vector.shape_cast %4 : vector<1x1x4x128xbf16> to vector<4x128xbf16>
    %6 = vector.shape_cast %0 : vector<1x8x4xbf16> to vector<8x4xbf16>
    %cst = arith.constant dense<0.000000e+00> : vector<8x128xf32>
    %7 = tpu.matmul %6, %5, %cst {dimension_numbers = #tpu.dot_dimension_numbers<[1], [0], [0], [1], [0, 0, 1, 1], [], []>} : vector<8x4xbf16>, vector<4x128xbf16>, vector<8x128xf32> -> vector<8x128xf32>
    %8 = arith.addf %3, %7 : vector<8x128xf32>
    %cst_8 = arith.constant 0.000000e+00 : f32
    %9 = vector.broadcast %cst_8 : f32 to vector<8x128xf32>
    %10 = arith.maximumf %8, %9 : vector<8x128xf32>
    %c0_9 = arith.constant 0 : index
    %c0_10 = arith.constant 0 : index
    %c0_11 = arith.constant 0 : index
    %11 = vector.load %arg4[%c0_9, %c0_10, %c0_11] : memref<1x8x128xf32, #tpu.memory_space<vmem>>, vector<1x8x128xf32>
    %12 = vector.shape_cast %11 : vector<1x8x128xf32> to vector<8x128xf32>
    %13 = vector.shape_cast %10 : vector<8x128xf32> to vector<1x8x128xf32>
    tpu.vector_store %arg4[%c0_9, %c0_10, %c0_11], %13 {strides = array<i32>} : memref<1x8x128xf32, #tpu.memory_space<vmem>>, vector<1x8x128xf32>,
    return
  }
  func.func @transform_0(%arg0: i32) -> (i32, i32, i32, i32) {
    %c0_i32 = arith.constant 0 : i32
    %c0_i32_0 = arith.constant 0 : i32
    %c0_i32_1 = arith.constant 0 : i32
    %c0_i32_2 = arith.constant 0 : i32
    return %arg0, %c0_i32, %c0_i32_0, %c0_i32_1 : i32, i32, i32, i32
  }
  func.func @transform_1(%arg0: i32) -> (i32, i32, i32) {
    %c0_i32 = arith.constant 0 : i32
    %c0_i32_0 = arith.constant 0 : i32
    %c0_i32_1 = arith.constant 0 : i32
    %c0_i32_2 = arith.constant 0 : i32
    return %c0_i32, %c0_i32_0, %c0_i32_1 : i32, i32, i32
  }
  func.func @transform_2(%arg0: i32) -> (i32, i32) {
    %c0_i32 = arith.constant 0 : i32
    %c0_i32_0 = arith.constant 0 : i32
    %c0_i32_1 = arith.constant 0 : i32
    return %c0_i32, %c0_i32_0 : i32, i32
  }
  func.func @transform_3(%arg0: i32) -> (i32, i32, i32) {
    %c0_i32 = arith.constant 0 : i32
    %c0_i32_0 = arith.constant 0 : i32
    %c0_i32_1 = arith.constant 0 : i32
    return %arg0, %c0_i32, %c0_i32_0 : i32, i32, i32
  }
}

</mosaic_0001>

<llo_original>
// kernel: conv_relu_forward.1
$region0: #{conv_relu_forward.1}
  #allocation0 [shape = 'u32[]', space=smem, size = 0x4, offset = 0x4, fixed_abs, tag = 'smem constant byte address 0x4 - core index']
  #allocation1 [shape = 'u32[72,128]{1,0:T(1,128)}', space=vmem, size = 0x9000, scoped, tag = 'internal scratch']
  %s0 = inlined_call_operand.vmem [shape: bf16[2,1,4,128], index: 0, kind: input, shape index: {}]
  %s1 = inlined_call_operand.vmem [shape: bf16[1,8,4], index: 1, kind: input, shape index: {}]
  %s2 = inlined_call_operand.vmem [shape: f32[8,1], index: 2, kind: input, shape index: {}]
  %s3 = inlined_call_operand.hbm [shape: f32[2,8,128], index: 3, kind: output, shape index: {}]
  %s4 = sld [smem:[#allocation0]]
  $region45: #{conv_relu_forward.1} parent=0
    _
  %s6 = ssub.s32 1, %s4
  %s7 = scalar_select 0, %s6, %s4
  $region1: #{conv_relu_forward.1} parent=0
    #allocation2 [shape = 'u8[8192]{0}', space=vmem, size = 0x2000, scoped, tag = 'output window, operand 0']
    #allocation3 [shape = 's32[2]{0}', space=sflag, size = 0x8, scoped, tag = 'scoped memory for conv_relu_forward.1']
    %8 = vsyncpa [#allocation3], 0
    %s9 = scalar_lea.sflag [#allocation3], 1
    %10 = vsyncpa %s9, 0
    loop: start=0, step=1, limit=4
    $region2: #{conv_relu_forward.1} parent=1 // loop_pre_header
      _
    $region3: #{conv_relu_forward.1} parent=1 // loop_header
      %s12 = sphi 0, %s16
      %p13 = scmp.ge.s32.totalorder %s12, 4
      %s22 = sphi 0, %s24
      %s25 = sphi 0, %s22
      %s26 = sphi 0, %s25
      %s42 = sphi 0, %s26
      %s46 = sphi 0, %s46
      %s48 = sphi 0, %s46
      %s49 = sphi 0, %s48
      %s63 = sphi 0, %s49
      %s67 = sphi 0, %s67
      %s69 = sphi 0, %s67
      %s70 = sphi 0, %s69
      %s84 = sphi 0, %s70
      %s90 = sphi 0, %s92
      %s93 = sphi 0, %s90
      %s94 = sphi 0, %s93
      %s110 = sphi 0, %s94
    $region4: #{conv_relu_forward.1} parent=1 // loop_header_branch
      %15 = sbr.rel (%p13) target = $region8
    $region5: #{conv_relu_forward.1} parent=1 // loop_body
      %s17 = ssub.s32 %s12, 1
      %s18 = ssub.s32 %s12, 2
      %s19 = sadd.s32 %s12, 1
      %s20 = ssub.s32 %s12, %s19
      %p21 = scmp.eq.s32.totalorder %s20, 0
      %s23 = sadd.s32 %s22, 1
      %s24 = scalar_select %p21, %s22, %s23
      %p27 = pneg %p21
      %p28 = scmp.eq.s32.totalorder %s12, 1
      %p29 = por %p27, %p28
      %p30 = scmp.ne.s32.totalorder %s22, %s25
      %p31 = scmp.eq.s32.totalorder %s12, 0
      %p32 = por %p30, %p31
      %p33 = scmp.ne.s32.totalorder %s22, %s25
      %p34 = scmp.eq.s32.totalorder %s17, 1
      %p35 = por %p33, %p34
      %p36 = scmp.ne.s32.totalorder %s25, %s26
      %p37 = scmp.eq.s32.totalorder %s17, 0
      %p38 = por %p36, %p37
      %p39 = scmp.ne.s32.totalorder %s25, %s26
      %p40 = scmp.eq.s32.totalorder %s18, 1
      %p41 = por %p39, %p40
      %p43 = scmp.ne.s32.totalorder %s26, %s42
      %p44 = scmp.eq.s32.totalorder %s18, 0
      %p45 = por %p43, %p44
      %s47 = sadd.s32 %s46, 1
      %p50 = scmp.eq.s32.totalorder %s12, 1
      %p51 = scmp.ne.s32.totalorder %s46, %s48
      %p52 = scmp.eq.s32.totalorder %s12, 0
      %p53 = por %p51, %p52
      %p54 = scmp.ne.s32.totalorder %s46, %s48
      %p55 = scmp.eq.s32.totalorder %s17, 1
      %p56 = por %p54, %p55
      %p57 = scmp.ne.s32.totalorder %s48, %s49
      %p58 = scmp.eq.s32.totalorder %s17, 0
      %p59 = por %p57, %p58
      %p60 = scmp.ne.s32.totalorder %s48, %s49
      %p61 = scmp.eq.s32.totalorder %s18, 1
      %p62 = por %p60, %p61
      %p64 = scmp.ne.s32.totalorder %s49, %s63
      %p65 = scmp.eq.s32.totalorder %s18, 0
      %p66 = por %p64, %p65
      %s68 = sadd.s32 %s67, 1
      %p71 = scmp.eq.s32.totalorder %s12, 1
      %p72 = scmp.ne.s32.totalorder %s67, %s69
      %p73 = scmp.eq.s32.totalorder %s12, 0
      %p74 = por %p72, %p73
      %p75 = scmp.ne.s32.totalorder %s67, %s69
      %p76 = scmp.eq.s32.totalorder %s17, 1
      %p77 = por %p75, %p76
      %p78 = scmp.ne.s32.totalorder %s69, %s70
      %p79 = scmp.eq.s32.totalorder %s17, 0
      %p80 = por %p78, %p79
      %p81 = scmp.ne.s32.totalorder %s69, %s70
      %p82 = scmp.eq.s32.totalorder %s18, 1
      %p83 = por %p81, %p82
      %p85 = scmp.ne.s32.totalorder %s70, %s84
      %p86 = scmp.eq.s32.totalorder %s18, 0
      %p87 = por %p85, %p86
      %s88 = ssub.s32 %s12, %s19
      %p89 = scmp.eq.s32.totalorder %s88, 0
      %s91 = sadd.s32 %s90, 1
      %s92 = scalar_select %p89, %s90, %s91
      %p95 = pneg %p89
      %p96 = scmp.eq.s32.totalorder %s12, 1
      %p97 = por %p95, %p96
      %p98 = scmp.ne.s32.totalorder %s90, %s93
      %p99 = scmp.eq.s32.totalorder %s12, 0
      %p100 = por %p98, %p99
      %p101 = scmp.ne.s32.totalorder %s90, %s93
      %p102 = scmp.eq.s32.totalorder %s17, 1
      %p103 = por %p101, %p102
      %p104 = scmp.ne.s32.totalorder %s93, %s94
      %p105 = scmp.eq.s32.totalorder %s17, 0
      %p106 = por %p104, %p105
      %p107 = scmp.ne.s32.totalorder %s93, %s94
      %p108 = scmp.eq.s32.totalorder %s18, 1
      %p109 = por %p107, %p108
      %p111 = scmp.ne.s32.totalorder %s94, %s110
      %p112 = scmp.eq.s32.totalorder %s18, 0
      %p113 = por %p111, %p112
      %p114 = scmp.le.s32.totalorder 1, %s12
      %p115 = scmp.lt.s32.totalorder %s12, 3
      %p116 = pnand %p114, %p115
      %p117 = pneg %p116
      // Predicated region
      $region9: #{conv_relu_forward.1} parent=5 // pred_check
        _
      $region10: #{conv_relu_forward.1} parent=5 // pred_check_branch
        %119 = sbr.rel (%p116) target = $region12
      $region11: #{conv_relu_forward.1} parent=5 // pred_region
        %s120 = ssub.s32 %s12, 1
        // Predicated region
        $region13: #{conv_relu_forward.1} parent=11 // pred_check
          %p121 = pneg %p59
        $region14: #{conv_relu_forward.1} parent=11 // pred_check_branch
          %123 = sbr.rel (%p121) target = $region16
        $region15: #{conv_relu_forward.1} parent=11 // pred_region
          _
        $region16: #{conv_relu_forward.1} parent=11 // pred_fallthru
          _
        // Predicated region
        $region17: #{conv_relu_forward.1} parent=11 // pred_check
          %p124 = pneg %p80
        $region18: #{conv_relu_forward.1} parent=11 // pred_check_branch
          %126 = sbr.rel (%p124) target = $region20
        $region19: #{conv_relu_forward.1} parent=11 // pred_region
          _
        $region20: #{conv_relu_forward.1} parent=11 // pred_fallthru
          _
      $region12: #{conv_relu_forward.1} parent=5 // pred_fallthru
        _
      %p127 = scmp.lt.s32.totalorder %s12, 2
      // Predicated region
      $region21: #{conv_relu_forward.1} parent=5 // pred_check
        %p128 = pneg %p127
      $region22: #{conv_relu_forward.1} parent=5 // pred_check_branch
        %130 = sbr.rel (%p128) target = $region24
      $region23: #{conv_relu_forward.1} parent=5 // pred_region
        // Predicated region
        $region25: #{conv_relu_forward.1} parent=23 // pred_check
          %p131 = pneg %p32
        $region26: #{conv_relu_forward.1} parent=23 // pred_check_branch
          %133 = sbr.rel (%p131) target = $region28
        $region27: #{conv_relu_forward.1} parent=23 // pred_region
          %p134 = scmp.lt.s32.totalorder %s12, 1
          %s135 = scalar_select %p134, %s12, 1
          %s136 = smul.addr %s135, 2
          %s137 = scalar_lea.vmem %s0, %s136
        $region28: #{conv_relu_forward.1} parent=23 // pred_fallthru
          _
      $region24: #{conv_relu_forward.1} parent=5 // pred_fallthru
        _
      %p138 = scmp.le.s32.totalorder 1, %s12
      %p139 = scmp.lt.s32.totalorder %s12, 3
      %p140 = pnand %p138, %p139
      %p141 = pneg %p140
      // Predicated region
      $region29: #{conv_relu_forward.1} parent=5 // pred_check
        _
      $region30: #{conv_relu_forward.1} parent=5 // pred_check_branch
        %143 = sbr.rel (%p140) target = $region32
      $region31: #{conv_relu_forward.1} parent=5 // pred_region
        %s144 = ssub.s32 %s12, 1
        %p145 = scmp.lt.s32.totalorder %s17, 1
        %s146 = scalar_select %p145, %s17, 1
        %s147 = smul.addr %s146, 2
        %s148 = scalar_lea.vmem %s0, %s147
        %p149 = pneg %p38
        %p150 = pneg %p35
        %p151 = pneg %p59
        %p152 = pneg %p56
        %p153 = pneg %p80
        %p154 = pneg %p77
        %p155 = pneg %p106
        %p156 = pneg %p103
        %s157 = sand.u32 %s93, 1
        %s158 = scalar_lea.sflag [#allocation3], %s157
        %s159 = sand.u32 %s93, 1
        %s160 = smul.addr %s159, 8
        %s161 = scalar_lea.vmem [#allocation2], %s160
        %p162 = scmp.lt.s32.totalorder %s17, 1
        %s163 = scalar_select %p162, %s17, 1
        %s164 = smul.addr %s163, 2
        %s165 = scalar_lea.vmem %s0, %s164
        %v167 = vld [vmem:[%s1] sm:$0xf]
        %v168 = vld [vmem:[%s2] sm:$0xff]
        %170 = vset.pattern.permute.xlu0 0
        %171 = vperm.xlu0 %170, %v168
        %v172 = vpop.permute.xlu0 %171
        %v174 = vld [vmem:[%s165] sm:$0x3]
        %vm175 = vcmask 31744
        %v177 = vsel %vm175, %v167, 0
        %vm179 = vcmask 1041408
        %v181 = vsel %vm179, %v174, 0
        %183 = vmatpush.bf16.msra.mxu0 0
        %184 = vmatpush.bf16.msra.mxu0 0
        %185 = vmatpush.bf16.msra.mxu0 0
        %186 = vmatpush.bf16.msra.mxu0 0
        %187 = vmatpush.bf16.msra.mxu0 0
        %188 = vmatpush.bf16.msra.mxu0 0
        %189 = vmatpush.bf16.msra.mxu0 0
        %190 = vmatpush.bf16.msra.mxu0 %v181
        %191 = vmatmul.bf16.gmra.mxu0 %v177
        %v192 = vpop.f32.mrf.mxu0
        %v193 = vadd.f32 0.0, %v192
        %v194 = vpop.f32.mrf.mxu0
        %195 = vdwg.mxu0
        %v196 = vadd.f32 %v172, %v193
        %v197 = vmax.f32 %v196, 0.0
        %198 = vst [vmem:[%s161] sm:$0xff] %v197
        %s199 = sand.u32 %s93, 1
        %s200 = scalar_lea.sflag [#allocation3], %s199
        %s201 = sand.u32 %s93, 1
        %s202 = smul.addr %s201, 8
        %s203 = scalar_lea.vmem [#allocation2], %s202
        // Predicated region
        $region33: #{conv_relu_forward.1} parent=31 // pred_check
          %p204 = pneg %p103
        $region34: #{conv_relu_forward.1} parent=31 // pred_check_branch
          %206 = sbr.rel (%p204) target = $region36
        $region35: #{conv_relu_forward.1} parent=31 // pred_region
          %208 = vsyncadd %s200, 0
          %s209 = smul.addr %s17, 8
          %s210 = scalar_lea.hbm %s3, %s209
          %s212 = sshll.u32 %s203, 4
          %s213 = int_to_ptr.vmem [resolvable:$true] %s212
          %s214 = sshll.u32 %s210, 4
          %s215 = int_to_ptr.hbm [resolvable:$true] %s214
          %217 = dma.vmem_to_hbm [thread:$0]  %s213, 128, %s215, %s200
        $region36: #{conv_relu_forward.1} parent=31 // pred_fallthru
          _
      $region32: #{conv_relu_forward.1} parent=5 // pred_fallthru
        _
      %p218 = scmp.le.s32.totalorder 2, %s12
      // Predicated region
      $region37: #{conv_relu_forward.1} parent=5 // pred_check
        %p219 = pneg %p218
      $region38: #{conv_relu_forward.1} parent=5 // pred_check_branch
        %221 = sbr.rel (%p219) target = $region40
      $region39: #{conv_relu_forward.1} parent=5 // pred_region
        %s222 = ssub.s32 %s12, 2
        // Predicated region
        $region41: #{conv_relu_forward.1} parent=39 // pred_check
          %p223 = pneg %p109
        $region42: #{conv_relu_forward.1} parent=39 // pred_check_branch
          %225 = sbr.rel (%p223) target = $region44
        $region43: #{conv_relu_forward.1} parent=39 // pred_region
          %s226 = sand.u32 %s94, 1
          %s227 = scalar_lea.sflag [#allocation3], %s226
          %s228 = sand.u32 %s94, 1
          %s229 = smul.addr %s228, 8
          %s230 = scalar_lea.vmem [#allocation2], %s229
          %232 = dma.done %s227, 128
        $region44: #{conv_relu_forward.1} parent=39 // pred_fallthru
          _
      $region40: #{conv_relu_forward.1} parent=5 // pred_fallthru
        _
    $region6: #{conv_relu_forward.1} parent=1 // loop_footer
      %s16 = sadd.s32 1, %s12
    $region7: #{conv_relu_forward.1} parent=1 // loop_footer_branch
      %11 = sbr.rel target = $region3
    $region8: #{conv_relu_forward.1} parent=1 // loop_exit
      _
    %233 = vsyncpa [#allocation3], 1
    %s234 = scalar_lea.sflag [#allocation3], 1
    %235 = vsyncpa %s234, 1

</llo_original>
